<compile_context>
chip_gen: v5e
topology: v5e:2x2
jax: 0.10.0
libtpu: 0.0.40
codegen_flags: <defaults>
</compile_context>

<pallas_src>
import functools

import jax
import jax.numpy as jnp
from jax.experimental import pallas as pl
from jax.experimental.pallas import tpu as pltpu


def _small_basic_block_kernel(x_ref, w1_ref, b1_ref, w2_ref, b2_ref,
                              w3_ref, b3_ref, w4_ref, b4_ref, mask_ref,
                              o_ref, *, width):
    # x_ref: (Cin, L) with L = nb*H*W (batch + spatial flattened onto lanes).
    W = width
    L = x_ref.shape[-1]

    x = x_ref[...]                                     # (Cin, L) f32
    m = mask_ref[...]                                  # (4, L): h!=0, h!=H-1, w!=0, w!=W-1
    m_up, m_dn, m_lf, m_rt = m[0:1], m[1:2], m[2:3], m[3:4]

    # ---- conv1: 1x1 + ReLU -- one (C4, Cin) @ (Cin, L) dot -----------------
    y1 = jnp.dot(w1_ref[...], x, preferred_element_type=jnp.float32)
    y1 = jnp.maximum(y1 + b1_ref[...], 0.0)            # (C4, L)

    # ---- conv2: (3,1), pad (1,0) along H + ReLU -----------------------------
    # Taps are circular lane rotations by +/-W; the h-boundary masks zero both
    # the conv padding and the wrap across row / image-seam boundaries.
    up = pltpu.roll(y1, W, axis=1) * m_up               # value at h-1 (kh=0 tap)
    dn = pltpu.roll(y1, L - W, axis=1) * m_dn           # value at h+1 (kh=2 tap)
    y2 = jnp.dot(w2_ref[...], jnp.concatenate([up, y1, dn], axis=0),
                 preferred_element_type=jnp.float32)    # (C4, 3*C4) @ (3*C4, L)
    y2 = jnp.maximum(y2 + b2_ref[...], 0.0)             # (C4, L)

    # ---- conv3: (1,3), pad (0,1) along W + ReLU -----------------------------
    lf = pltpu.roll(y2, 1, axis=1) * m_lf                # value at w-1 (kw=0 tap)
    rt = pltpu.roll(y2, L - 1, axis=1) * m_rt            # value at w+1 (kw=2 tap)
    y3 = jnp.dot(w3_ref[...], jnp.concatenate([lf, y2, rt], axis=0),
                 preferred_element_type=jnp.float32)
    y3 = jnp.maximum(y3 + b3_ref[...], 0.0)              # (C4, L)

    # ---- conv4: 1x1 (no activation) -----------------------------------------
    y4 = jnp.dot(w4_ref[...], y3, preferred_element_type=jnp.float32)
    o_ref[...] = (y4 + b4_ref[...]).astype(o_ref.dtype)  # lane-dense store


def _pick_sub_batch(N, Cin, Cout, C4, HW, *, min_steps=4,
                    vmem_block_budget=24 * 1024 * 1024):
    """Images folded per grid step: the largest divisor of N that keeps the
    grid at >= min_steps steps (megacore sharding + pipelining), keeps the
    lane dim a multiple of 128, and fits a conservative VMEM budget."""
    # Rough per-image bytes: double-buffered in+out blocks plus live temps.
    per_image = (2 * (Cin + Cout) + 6 * C4) * HW * 4
    max_nb = max(1, vmem_block_budget // per_image)
    target_steps = min(min_steps, N)
    nb = None
    for d in range(1, N + 1):
        if N % d:
            continue
        lane_ok = ((d * HW) % 128 == 0) or (d == N)      # (8,128) layout rule
        if lane_ok and d <= max_nb and (N // d) >= target_steps:
            nb = d
    if nb is None:
        nb = N                                           # full-array block fallback
    return nb


def small_basic_block_pallas(x_nchw, conv_params):
    """Run the fused block.  x_nchw: (N, Cin, H, W) float32."""
    (w1, b1), (w2, b2), (w3, b3), (w4, b4) = conv_params   # PyTorch OIHW layout
    N, Cin, H, W = x_nchw.shape
    C4 = w1.shape[0]
    Cout = w4.shape[0]
    HW = H * W

    # Channels-major with (batch, spatial) flattened onto the lane axis.
    x_cm = jnp.transpose(x_nchw, (1, 0, 2, 3)).reshape(Cin, N * HW)

    # One matmul matrix per conv; 3-tap convs pre-stacked along the contraction
    # dim (tap order kh/kw = 0,1,2  <->  [shift-back, center, shift-fwd]).
    w1m = w1[:, :, 0, 0]                                                 # (C4, Cin)
    w2m = jnp.concatenate([w2[:, :, 0, 0], w2[:, :, 1, 0], w2[:, :, 2, 0]],
                          axis=1)                                        # (C4, 3*C4)
    w3m = jnp.concatenate([w3[:, :, 0, 0], w3[:, :, 0, 1], w3[:, :, 0, 2]],
                          axis=1)                                        # (C4, 3*C4)
    w4m = w4[:, :, 0, 0]                                                 # (Cout, C4)
    b1m = b1.reshape(C4, 1)
    b2m = b2.reshape(C4, 1)
    b3m = b3.reshape(C4, 1)
    b4m = b4.reshape(Cout, 1)

    nb = _pick_sub_batch(N, Cin, Cout, C4, HW)
    L = nb * HW
    grid = (N // nb,)

    # Boundary-validity masks over one block's lanes (identical every step):
    # rows are [h != 0, h != H-1, w != 0, w != W-1].  They zero both the conv
    # padding and the circular-roll wrap across row / image-seam boundaries.
    h_idx = jnp.tile(jnp.repeat(jnp.arange(H, dtype=jnp.int32), W), nb)   # (L,)
    w_idx = jnp.tile(jnp.arange(W, dtype=jnp.int32), H * nb)              # (L,)
    mask = jnp.stack([h_idx != 0, h_idx != H - 1,
                      w_idx != 0, w_idx != W - 1]).astype(jnp.float32)    # (4, L)

    kernel = functools.partial(_small_basic_block_kernel, width=W)

    grid_spec = pltpu.PrefetchScalarGridSpec(
        num_scalar_prefetch=0,
        grid=grid,
        in_specs=[
            pl.BlockSpec((Cin, L), lambda i: (0, i)),        # activations
            pl.BlockSpec((C4, Cin), lambda i: (0, 0)),        # w1
            pl.BlockSpec((C4, 1), lambda i: (0, 0)),          # b1
            pl.BlockSpec((C4, 3 * C4), lambda i: (0, 0)),     # w2 (tap-stacked)
            pl.BlockSpec((C4, 1), lambda i: (0, 0)),          # b2
            pl.BlockSpec((C4, 3 * C4), lambda i: (0, 0)),     # w3 (tap-stacked)
            pl.BlockSpec((C4, 1), lambda i: (0, 0)),          # b3
            pl.BlockSpec((Cout, C4), lambda i: (0, 0)),       # w4
            pl.BlockSpec((Cout, 1), lambda i: (0, 0)),        # b4
            pl.BlockSpec((4, L), lambda i: (0, 0)),           # boundary masks
        ],
        out_specs=pl.BlockSpec((Cout, L), lambda i: (0, i)),
    )

    out = pl.pallas_call(
        kernel,
        out_shape=jax.ShapeDtypeStruct((Cout, N * HW), jnp.float32),
        grid_spec=grid_spec,
        compiler_params=pltpu.CompilerParams(
            dimension_semantics=("parallel",),
            vmem_limit_bytes=32 * 1024 * 1024),
    )(x_cm, w1m, b1m, w2m, b2m, w3m, b3m, w4m, b4m, mask)

    # Back to NCHW.
    return jnp.transpose(out.reshape(Cout, N, H, W), (1, 0, 2, 3))


def small_basic_block_ref(x_nchw, conv_params):
    """Pure-JAX reference with the same semantics as the PyTorch module."""
    def conv(x, w, b, pad):
        y = jax.lax.conv_general_dilated(
            x, w, window_strides=(1, 1), padding=pad,
            dimension_numbers=("NCHW", "OIHW", "NCHW"))
        return y + b[None, :, None, None]

    (w1, b1), (w2, b2), (w3, b3), (w4, b4) = conv_params
    y = jax.nn.relu(conv(x_nchw, w1, b1, ((0, 0), (0, 0))))
    y = jax.nn.relu(conv(y, w2, b2, ((1, 1), (0, 0))))
    y = jax.nn.relu(conv(y, w3, b3, ((0, 0), (1, 1))))
    y = conv(y, w4, b4, ((0, 0), (0, 0)))
    return y


def make_params(key, ch_in, ch_out):
    """Deterministic synthetic parameters, PyTorch Conv2d (O, I, kh, kw) layout."""
    c4 = ch_out // 4
    shapes = [
        ((c4, ch_in, 1, 1), (c4,)),
        ((c4, c4, 3, 1), (c4,)),
        ((c4, c4, 1, 3), (c4,)),
        ((ch_out, c4, 1, 1), (ch_out,)),
    ]
    params = []
    for ws, bs in shapes:
        key, kw_, kb_ = jax.random.split(key, 3)
        w = 0.1 * jax.random.normal(kw_, ws, dtype=jnp.float32)
        b = 0.1 * jax.random.normal(kb_, bs, dtype=jnp.float32)
        params.append((w, b))
    return params


if __name__ == "__main__":
    N, CH_IN, CH_OUT, H, W = 2, 4, 8, 16, 16

    key = jax.random.PRNGKey(0)
    key, kx = jax.random.split(key)
    x = jax.random.normal(kx, (N, CH_IN, H, W), dtype=jnp.float32)
    params = make_params(key, CH_IN, CH_OUT)

    out = small_basic_block_pallas(x, params)
    out = jax.block_until_ready(out)

    ref = jax.block_until_ready(small_basic_block_ref(x, params))

    assert out.shape == (N, CH_OUT, H, W), out.shape
    assert jnp.allclose(out, ref, atol=1e-4, rtol=1e-4), (
        float(jnp.max(jnp.abs(out - ref))))

    print("KERNEL_OK")
</pallas_src>

<mosaic_0001>
module attributes {stable_mosaic.version = 11 : i64} {
  func.func @_small_basic_block_kernel(%arg0: i32, %arg1: memref<4x256xf32, #tpu.memory_space<vmem>>, %arg2: memref<2x4xf32, #tpu.memory_space<vmem>>, %arg3: memref<2x1xf32, #tpu.memory_space<vmem>>, %arg4: memref<2x6xf32, #tpu.memory_space<vmem>>, %arg5: memref<2x1xf32, #tpu.memory_space<vmem>>, %arg6: memref<2x6xf32, #tpu.memory_space<vmem>>, %arg7: memref<2x1xf32, #tpu.memory_space<vmem>>, %arg8: memref<8x2xf32, #tpu.memory_space<vmem>>, %arg9: memref<8x1xf32, #tpu.memory_space<vmem>>, %arg10: memref<4x256xf32, #tpu.memory_space<vmem>>, %arg11: memref<8x256xf32, #tpu.memory_space<vmem>>) attributes {dimension_semantics = [#tpu.dimension_semantics<parallel>], iteration_bounds = array<i64: 2>, scalar_prefetch = 0 : i64, scratch_operands = 0 : i64, tpu.core_type = #tpu.core_type<tc>, window_params = [{transform_indices = @transform_0, window_bounds = array<i64: 4, 256>}, {pipeline_mode = #tpu.pipeline_mode<synchronous>, transform_indices = @transform_1, window_bounds = array<i64: 2, 4>}, {pipeline_mode = #tpu.pipeline_mode<synchronous>, transform_indices = @transform_2, window_bounds = array<i64: 2, 1>}, {pipeline_mode = #tpu.pipeline_mode<synchronous>, transform_indices = @transform_3, window_bounds = array<i64: 2, 6>}, {pipeline_mode = #tpu.pipeline_mode<synchronous>, transform_indices = @transform_4, window_bounds = array<i64: 2, 1>}, {pipeline_mode = #tpu.pipeline_mode<synchronous>, transform_indices = @transform_5, window_bounds = array<i64: 2, 6>}, {pipeline_mode = #tpu.pipeline_mode<synchronous>, transform_indices = @transform_6, window_bounds = array<i64: 2, 1>}, {pipeline_mode = #tpu.pipeline_mode<synchronous>, transform_indices = @transform_7, window_bounds = array<i64: 8, 2>}, {pipeline_mode = #tpu.pipeline_mode<synchronous>, transform_indices = @transform_8, window_bounds = array<i64: 8, 1>}, {pipeline_mode = #tpu.pipeline_mode<synchronous>, transform_indices = @transform_9, window_bounds = array<i64: 4, 256>}, {transform_indices = @transform_10, window_bounds = array<i64: 8, 256>}]} {
    %c0 = arith.constant 0 : index
    %c0_0 = arith.constant 0 : index
    %0 = vector.load %arg1[%c0, %c0_0] : memref<4x256xf32, #tpu.memory_space<vmem>>, vector<4x256xf32>
    %c0_1 = arith.constant 0 : index
    %c0_2 = arith.constant 0 : index
    %1 = vector.load %arg10[%c0_1, %c0_2] : memref<4x256xf32, #tpu.memory_space<vmem>>, vector<4x256xf32>
    %2 = vector.extract_strided_slice %1 {offsets = [0, 0], sizes = [1, 256], strides = [1, 1]} : vector<4x256xf32> to vector<1x256xf32>
    %3 = vector.extract_strided_slice %1 {offsets = [1, 0], sizes = [1, 256], strides = [1, 1]} : vector<4x256xf32> to vector<1x256xf32>
    %4 = vector.extract_strided_slice %1 {offsets = [2, 0], sizes = [1, 256], strides = [1, 1]} : vector<4x256xf32> to vector<1x256xf32>
    %5 = vector.extract_strided_slice %1 {offsets = [3, 0], sizes = [1, 256], strides = [1, 1]} : vector<4x256xf32> to vector<1x256xf32>
    %c0_3 = arith.constant 0 : index
    %c0_4 = arith.constant 0 : index
    %6 = vector.load %arg2[%c0_3, %c0_4] : memref<2x4xf32, #tpu.memory_space<vmem>>, vector<2x4xf32>
    %cst = arith.constant dense<0.000000e+00> : vector<2x256xf32>
    %7 = tpu.matmul %6, %0, %cst {dimension_numbers = #tpu.dot_dimension_numbers<[1], [0], [0], [1], [0, 0, 1, 1], [], []>} : vector<2x4xf32>, vector<4x256xf32>, vector<2x256xf32> -> vector<2x256xf32>
    %c0_5 = arith.constant 0 : index
    %c0_6 = arith.constant 0 : index
    %8 = vector.load %arg3[%c0_5, %c0_6] : memref<2x1xf32, #tpu.memory_space<vmem>>, vector<2x1xf32>
    %9 = vector.broadcast %8 : vector<2x1xf32> to vector<2x256xf32>
    %10 = arith.addf %7, %9 : vector<2x256xf32>
    %cst_7 = arith.constant 0.000000e+00 : f32
    %11 = vector.broadcast %cst_7 : f32 to vector<2x256xf32>
    %12 = arith.maximumf %10, %11 : vector<2x256xf32>
    %c16_i32 = arith.constant 16 : i32
    %13 = tpu.dynamic_rotate %12 by %c16_i32 dim 1 : vector<2x256xf32>, i32 -> vector<2x256xf32>
    %14 = vector.broadcast %2 : vector<1x256xf32> to vector<2x256xf32>
    %15 = arith.mulf %13, %14 : vector<2x256xf32>
    %c240_i32 = arith.constant 240 : i32
    %16 = tpu.dynamic_rotate %12 by %c240_i32 dim 1 : vector<2x256xf32>, i32 -> vector<2x256xf32>
    %17 = vector.broadcast %3 : vector<1x256xf32> to vector<2x256xf32>
    %18 = arith.mulf %16, %17 : vector<2x256xf32>
    %c0_8 = arith.constant 0 : index
    %c0_9 = arith.constant 0 : index
    %19 = vector.load %arg4[%c0_8, %c0_9] : memref<2x6xf32, #tpu.memory_space<vmem>>, vector<2x6xf32>
    %20 = tpu.concatenate %15, %12, %18 in 0 : vector<2x256xf32>, vector<2x256xf32>, vector<2x256xf32> -> vector<6x256xf32>
    %cst_10 = arith.constant dense<0.000000e+00> : vector<2x256xf32>
    %21 = tpu.matmul %19, %20, %cst_10 {dimension_numbers = #tpu.dot_dimension_numbers<[1], [0], [0], [1], [0, 0, 1, 1], [], []>} : vector<2x6xf32>, vector<6x256xf32>, vector<2x256xf32> -> vector<2x256xf32>
    %c0_11 = arith.constant 0 : index
    %c0_12 = arith.constant 0 : index
    %22 = vector.load %arg5[%c0_11, %c0_12] : memref<2x1xf32, #tpu.memory_space<vmem>>, vector<2x1xf32>
    %23 = vector.broadcast %22 : vector<2x1xf32> to vector<2x256xf32>
    %24 = arith.addf %21, %23 : vector<2x256xf32>
    %cst_13 = arith.constant 0.000000e+00 : f32
    %25 = vector.broadcast %cst_13 : f32 to vector<2x256xf32>
    %26 = arith.maximumf %24, %25 : vector<2x256xf32>
    %c1_i32 = arith.constant 1 : i32
    %27 = tpu.dynamic_rotate %26 by %c1_i32 dim 1 : vector<2x256xf32>, i32 -> vector<2x256xf32>
    %28 = vector.broadcast %4 : vector<1x256xf32> to vector<2x256xf32>
    %29 = arith.mulf %27, %28 : vector<2x256xf32>
    %c255_i32 = arith.constant 255 : i32
    %30 = tpu.dynamic_rotate %26 by %c255_i32 dim 1 : vector<2x256xf32>, i32 -> vector<2x256xf32>
    %31 = vector.broadcast %5 : vector<1x256xf32> to vector<2x256xf32>
    %32 = arith.mulf %30, %31 : vector<2x256xf32>
    %c0_14 = arith.constant 0 : index
    %c0_15 = arith.constant 0 : index
    %33 = vector.load %arg6[%c0_14, %c0_15] : memref<2x6xf32, #tpu.memory_space<vmem>>, vector<2x6xf32>
    %34 = tpu.concatenate %29, %26, %32 in 0 : vector<2x256xf32>, vector<2x256xf32>, vector<2x256xf32> -> vector<6x256xf32>
    %cst_16 = arith.constant dense<0.000000e+00> : vector<2x256xf32>
    %35 = tpu.matmul %33, %34, %cst_16 {dimension_numbers = #tpu.dot_dimension_numbers<[1], [0], [0], [1], [0, 0, 1, 1], [], []>} : vector<2x6xf32>, vector<6x256xf32>, vector<2x256xf32> -> vector<2x256xf32>
    %c0_17 = arith.constant 0 : index
    %c0_18 = arith.constant 0 : index
    %36 = vector.load %arg7[%c0_17, %c0_18] : memref<2x1xf32, #tpu.memory_space<vmem>>, vector<2x1xf32>
    %37 = vector.broadcast %36 : vector<2x1xf32> to vector<2x256xf32>
    %38 = arith.addf %35, %37 : vector<2x256xf32>
    %cst_19 = arith.constant 0.000000e+00 : f32
    %39 = vector.broadcast %cst_19 : f32 to vector<2x256xf32>
    %40 = arith.maximumf %38, %39 : vector<2x256xf32>
    %c0_20 = arith.constant 0 : index
    %c0_21 = arith.constant 0 : index
    %41 = vector.load %arg8[%c0_20, %c0_21] : memref<8x2xf32, #tpu.memory_space<vmem>>, vector<8x2xf32>
    %cst_22 = arith.constant dense<0.000000e+00> : vector<8x256xf32>
    %42 = tpu.matmul %41, %40, %cst_22 {dimension_numbers = #tpu.dot_dimension_numbers<[1], [0], [0], [1], [0, 0, 1, 1], [], []>} : vector<8x2xf32>, vector<2x256xf32>, vector<8x256xf32> -> vector<8x256xf32>
    %c0_23 = arith.constant 0 : index
    %c0_24 = arith.constant 0 : index
    %43 = vector.load %arg9[%c0_23, %c0_24] : memref<8x1xf32, #tpu.memory_space<vmem>>, vector<8x1xf32>
    %44 = vector.broadcast %43 : vector<8x1xf32> to vector<8x256xf32>
    %45 = arith.addf %42, %44 : vector<8x256xf32>
    %c0_25 = arith.constant 0 : index
    %c0_26 = arith.constant 0 : index
    %46 = vector.load %arg11[%c0_25, %c0_26] : memref<8x256xf32, #tpu.memory_space<vmem>>, vector<8x256xf32>
    tpu.vector_store %arg11[%c0_25, %c0_26], %45 {strides = array<i32>} : memref<8x256xf32, #tpu.memory_space<vmem>>, vector<8x256xf32>,
    return
  }
  func.func @transform_0(%arg0: i32) -> (i32, i32) {
    %c0_i32 = arith.constant 0 : i32
    %c0_i32_0 = arith.constant 0 : i32
    return %c0_i32, %arg0 : i32, i32
  }
  func.func @transform_1(%arg0: i32) -> (i32, i32) {
    %c0_i32 = arith.constant 0 : i32
    %c0_i32_0 = arith.constant 0 : i32
    %c0_i32_1 = arith.constant 0 : i32
    return %c0_i32, %c0_i32_0 : i32, i32
  }
  func.func @transform_2(%arg0: i32) -> (i32, i32) {
    %c0_i32 = arith.constant 0 : i32
    %c0_i32_0 = arith.constant 0 : i32
    %c0_i32_1 = arith.constant 0 : i32
    return %c0_i32, %c0_i32_0 : i32, i32
  }
  func.func @transform_3(%arg0: i32) -> (i32, i32) {
    %c0_i32 = arith.constant 0 : i32
    %c0_i32_0 = arith.constant 0 : i32
    %c0_i32_1 = arith.constant 0 : i32
    return %c0_i32, %c0_i32_0 : i32, i32
  }
  func.func @transform_4(%arg0: i32) -> (i32, i32) {
    %c0_i32 = arith.constant 0 : i32
    %c0_i32_0 = arith.constant 0 : i32
    %c0_i32_1 = arith.constant 0 : i32
    return %c0_i32, %c0_i32_0 : i32, i32
  }
  func.func @transform_5(%arg0: i32) -> (i32, i32) {
    %c0_i32 = arith.constant 0 : i32
    %c0_i32_0 = arith.constant 0 : i32
    %c0_i32_1 = arith.constant 0 : i32
    return %c0_i32, %c0_i32_0 : i32, i32
  }
  func.func @transform_6(%arg0: i32) -> (i32, i32) {
    %c0_i32 = arith.constant 0 : i32
    %c0_i32_0 = arith.constant 0 : i32
    %c0_i32_1 = arith.constant 0 : i32
    return %c0_i32, %c0_i32_0 : i32, i32
  }
  func.func @transform_7(%arg0: i32) -> (i32, i32) {
    %c0_i32 = arith.constant 0 : i32
    %c0_i32_0 = arith.constant 0 : i32
    %c0_i32_1 = arith.constant 0 : i32
    return %c0_i32, %c0_i32_0 : i32, i32
  }
  func.func @transform_8(%arg0: i32) -> (i32, i32) {
    %c0_i32 = arith.constant 0 : i32
    %c0_i32_0 = arith.constant 0 : i32
    %c0_i32_1 = arith.constant 0 : i32
    return %c0_i32, %c0_i32_0 : i32, i32
  }
  func.func @transform_9(%arg0: i32) -> (i32, i32) {
    %c0_i32 = arith.constant 0 : i32
    %c0_i32_0 = arith.constant 0 : i32
    %c0_i32_1 = arith.constant 0 : i32
    return %c0_i32, %c0_i32_0 : i32, i32
  }
  func.func @transform_10(%arg0: i32) -> (i32, i32) {
    %c0_i32 = arith.constant 0 : i32
    %c0_i32_0 = arith.constant 0 : i32
    return %c0_i32, %arg0 : i32, i32
  }
}

</mosaic_0001>

<llo_original>
// kernel: tpu_custom_call.1
$region0: #{tpu_custom_call.1}
  #allocation0 [shape = 'u32[]', space=smem, size = 0x4, offset = 0x4, fixed_abs, tag = 'smem constant byte address 0x4 - core index']
  #allocation1 [shape = 'u32[72,128]{1,0:T(1,128)}', space=vmem, size = 0x9000, scoped, tag = 'internal scratch']
  %s0 = inlined_call_operand.vmem [shape: f32[4,512], index: 0, kind: input, shape index: {}]
  %s1 = inlined_call_operand.vmem [shape: f32[2,4], index: 1, kind: input, shape index: {}]
  %s2 = inlined_call_operand.vmem [shape: f32[2,1], index: 2, kind: input, shape index: {}]
  %s3 = inlined_call_operand.vmem [shape: f32[2,6], index: 3, kind: input, shape index: {}]
  %s4 = inlined_call_operand.vmem [shape: f32[2,1], index: 4, kind: input, shape index: {}]
  %s5 = inlined_call_operand.vmem [shape: f32[2,6], index: 5, kind: input, shape index: {}]
  %s6 = inlined_call_operand.vmem [shape: f32[2,1], index: 6, kind: input, shape index: {}]
  %s7 = inlined_call_operand.vmem [shape: f32[8,2], index: 7, kind: input, shape index: {}]
  %s8 = inlined_call_operand.vmem [shape: f32[8,1], index: 8, kind: input, shape index: {}]
  %s9 = inlined_call_operand.hbm [shape: f32[4,256], index: 9, kind: input, shape index: {}]
  %s10 = inlined_call_operand.hbm [shape: f32[8,512], index: 10, kind: output, shape index: {}]
  %s11 = sld [smem:[#allocation0]]
  $region77: #{tpu_custom_call.1} parent=0
    _
  %s13 = ssub.s32 1, %s11
  %s14 = scalar_select 0, %s13, %s11
  $region1: #{tpu_custom_call.1} parent=0
    #allocation2 [shape = 'u8[4096]{0}', space=vmem, size = 0x1000, scoped, tag = 'input window, operand 9, single buffered']
    #allocation3 [shape = 's32[2]{0}', space=sflag, size = 0x8, scoped, tag = 'scoped memory for tpu_custom_call.1']
    #allocation4 [shape = 's32[2]{0}', space=sflag, size = 0x8, scoped, tag = 'scoped memory for tpu_custom_call.1']
    #allocation5 [shape = 'u8[16384]{0}', space=vmem, size = 0x4000, scoped, tag = 'output window, operand 0']
    %15 = vsyncpa [#allocation3], 0
    %16 = vsyncpa [#allocation4], 0
    %s17 = scalar_lea.sflag [#allocation4], 1
    %18 = vsyncpa %s17, 0
    loop: start=0, step=1, limit=4
    $region2: #{tpu_custom_call.1} parent=1 // loop_pre_header
      _
    $region3: #{tpu_custom_call.1} parent=1 // loop_header
      %s20 = sphi 0, %s24
      %p21 = scmp.ge.s32.totalorder %s20, 4
      %s30 = sphi 0, %s32
      %s33 = sphi 0, %s30
      %s34 = sphi 0, %s33
      %s50 = sphi 0, %s34
      %s54 = sphi 0, %s54
      %s56 = sphi 0, %s54
      %s57 = sphi 0, %s56
      %s71 = sphi 0, %s57
      %s75 = sphi 0, %s75
      %s77 = sphi 0, %s75
      %s78 = sphi 0, %s77
      %s92 = sphi 0, %s78
      %s96 = sphi 0, %s96
      %s98 = sphi 0, %s96
      %s99 = sphi 0, %s98
      %s113 = sphi 0, %s99
      %s117 = sphi 0, %s117
      %s119 = sphi 0, %s117
      %s120 = sphi 0, %s119
      %s134 = sphi 0, %s120
      %s138 = sphi 0, %s138
      %s140 = sphi 0, %s138
      %s141 = sphi 0, %s140
      %s155 = sphi 0, %s141
      %s159 = sphi 0, %s159
      %s161 = sphi 0, %s159
      %s162 = sphi 0, %s161
      %s176 = sphi 0, %s162
      %s180 = sphi 0, %s180
      %s182 = sphi 0, %s180
      %s183 = sphi 0, %s182
      %s197 = sphi 0, %s183
      %s201 = sphi 0, %s201
      %s203 = sphi 0, %s201
      %s204 = sphi 0, %s203
      %s218 = sphi 0, %s204
      %s222 = sphi 0, %s222
      %s224 = sphi 0, %s222
      %s225 = sphi 0, %s224
      %s239 = sphi 0, %s225
      %s245 = sphi 0, %s247
      %s248 = sphi 0, %s245
      %s249 = sphi 0, %s248
      %s265 = sphi 0, %s249
    $region4: #{tpu_custom_call.1} parent=1 // loop_header_branch
      %23 = sbr.rel (%p21) target = $region8
    $region5: #{tpu_custom_call.1} parent=1 // loop_body
      %s25 = ssub.s32 %s20, 1
      %s26 = ssub.s32 %s20, 2
      %s27 = sadd.s32 %s20, 1
      %s28 = ssub.s32 %s20, %s27
      %p29 = scmp.eq.s32.totalorder %s28, 0
      %s31 = sadd.s32 %s30, 1
      %s32 = scalar_select %p29, %s30, %s31
      %p35 = pneg %p29
      %p36 = scmp.eq.s32.totalorder %s20, 1
      %p37 = por %p35, %p36
      %p38 = scmp.ne.s32.totalorder %s30, %s33
      %p39 = scmp.eq.s32.totalorder %s20, 0
      %p40 = por %p38, %p39
      %p41 = scmp.ne.s32.totalorder %s30, %s33
      %p42 = scmp.eq.s32.totalorder %s25, 1
      %p43 = por %p41, %p42
      %p44 = scmp.ne.s32.totalorder %s33, %s34
      %p45 = scmp.eq.s32.totalorder %s25, 0
      %p46 = por %p44, %p45
      %p47 = scmp.ne.s32.totalorder %s33, %s34
      %p48 = scmp.eq.s32.totalorder %s26, 1
      %p49 = por %p47, %p48
      %p51 = scmp.ne.s32.totalorder %s34, %s50
      %p52 = scmp.eq.s32.totalorder %s26, 0
      %p53 = por %p51, %p52
      %s55 = sadd.s32 %s54, 1
      %p58 = scmp.eq.s32.totalorder %s20, 1
      %p59 = scmp.ne.s32.totalorder %s54, %s56
      %p60 = scmp.eq.s32.totalorder %s20, 0
      %p61 = por %p59, %p60
      %p62 = scmp.ne.s32.totalorder %s54, %s56
      %p63 = scmp.eq.s32.totalorder %s25, 1
      %p64 = por %p62, %p63
      %p65 = scmp.ne.s32.totalorder %s56, %s57
      %p66 = scmp.eq.s32.totalorder %s25, 0
      %p67 = por %p65, %p66
      %p68 = scmp.ne.s32.totalorder %s56, %s57
      %p69 = scmp.eq.s32.totalorder %s26, 1
      %p70 = por %p68, %p69
      %p72 = scmp.ne.s32.totalorder %s57, %s71
      %p73 = scmp.eq.s32.totalorder %s26, 0
      %p74 = por %p72, %p73
      %s76 = sadd.s32 %s75, 1
      %p79 = scmp.eq.s32.totalorder %s20, 1
      %p80 = scmp.ne.s32.totalorder %s75, %s77
      %p81 = scmp.eq.s32.totalorder %s20, 0
      %p82 = por %p80, %p81
      %p83 = scmp.ne.s32.totalorder %s75, %s77
      %p84 = scmp.eq.s32.totalorder %s25, 1
      %p85 = por %p83, %p84
      %p86 = scmp.ne.s32.totalorder %s77, %s78
      %p87 = scmp.eq.s32.totalorder %s25, 0
      %p88 = por %p86, %p87
      %p89 = scmp.ne.s32.totalorder %s77, %s78
      %p90 = scmp.eq.s32.totalorder %s26, 1
      %p91 = por %p89, %p90
      %p93 = scmp.ne.s32.totalorder %s78, %s92
      %p94 = scmp.eq.s32.totalorder %s26, 0
      %p95 = por %p93, %p94
      %s97 = sadd.s32 %s96, 1
      %p100 = scmp.eq.s32.totalorder %s20, 1
      %p101 = scmp.ne.s32.totalorder %s96, %s98
      %p102 = scmp.eq.s32.totalorder %s20, 0
      %p103 = por %p101, %p102
      %p104 = scmp.ne.s32.totalorder %s96, %s98
      %p105 = scmp.eq.s32.totalorder %s25, 1
      %p106 = por %p104, %p105
      %p107 = scmp.ne.s32.totalorder %s98, %s99
      %p108 = scmp.eq.s32.totalorder %s25, 0
      %p109 = por %p107, %p108
      %p110 = scmp.ne.s32.totalorder %s98, %s99
      %p111 = scmp.eq.s32.totalorder %s26, 1
      %p112 = por %p110, %p111
      %p114 = scmp.ne.s32.totalorder %s99, %s113
      %p115 = scmp.eq.s32.totalorder %s26, 0
      %p116 = por %p114, %p115
      %s118 = sadd.s32 %s117, 1
      %p121 = scmp.eq.s32.totalorder %s20, 1
      %p122 = scmp.ne.s32.totalorder %s117, %s119
      %p123 = scmp.eq.s32.totalorder %s20, 0
      %p124 = por %p122, %p123
      %p125 = scmp.ne.s32.totalorder %s117, %s119
      %p126 = scmp.eq.s32.totalorder %s25, 1
      %p127 = por %p125, %p126
      %p128 = scmp.ne.s32.totalorder %s119, %s120
      %p129 = scmp.eq.s32.totalorder %s25, 0
      %p130 = por %p128, %p129
      %p131 = scmp.ne.s32.totalorder %s119, %s120
      %p132 = scmp.eq.s32.totalorder %s26, 1
      %p133 = por %p131, %p132
      %p135 = scmp.ne.s32.totalorder %s120, %s134
      %p136 = scmp.eq.s32.totalorder %s26, 0
      %p137 = por %p135, %p136
      %s139 = sadd.s32 %s138, 1
      %p142 = scmp.eq.s32.totalorder %s20, 1
      %p143 = scmp.ne.s32.totalorder %s138, %s140
      %p144 = scmp.eq.s32.totalorder %s20, 0
      %p145 = por %p143, %p144
      %p146 = scmp.ne.s32.totalorder %s138, %s140
      %p147 = scmp.eq.s32.totalorder %s25, 1
      %p148 = por %p146, %p147
      %p149 = scmp.ne.s32.totalorder %s140, %s141
      %p150 = scmp.eq.s32.totalorder %s25, 0
      %p151 = por %p149, %p150
      %p152 = scmp.ne.s32.totalorder %s140, %s141
      %p153 = scmp.eq.s32.totalorder %s26, 1
      %p154 = por %p152, %p153
      %p156 = scmp.ne.s32.totalorder %s141, %s155
      %p157 = scmp.eq.s32.totalorder %s26, 0
      %p158 = por %p156, %p157
      %s160 = sadd.s32 %s159, 1
      %p163 = scmp.eq.s32.totalorder %s20, 1
      %p164 = scmp.ne.s32.totalorder %s159, %s161
      %p165 = scmp.eq.s32.totalorder %s20, 0
      %p166 = por %p164, %p165
      %p167 = scmp.ne.s32.totalorder %s159, %s161
      %p168 = scmp.eq.s32.totalorder %s25, 1
      %p169 = por %p167, %p168
      %p170 = scmp.ne.s32.totalorder %s161, %s162
      %p171 = scmp.eq.s32.totalorder %s25, 0
      %p172 = por %p170, %p171
      %p173 = scmp.ne.s32.totalorder %s161, %s162
      %p174 = scmp.eq.s32.totalorder %s26, 1
      %p175 = por %p173, %p174
      %p177 = scmp.ne.s32.totalorder %s162, %s176
      %p178 = scmp.eq.s32.totalorder %s26, 0
      %p179 = por %p177, %p178
      %s181 = sadd.s32 %s180, 1
      %p184 = scmp.eq.s32.totalorder %s20, 1
      %p185 = scmp.ne.s32.totalorder %s180, %s182
      %p186 = scmp.eq.s32.totalorder %s20, 0
      %p187 = por %p185, %p186
      %p188 = scmp.ne.s32.totalorder %s180, %s182
      %p189 = scmp.eq.s32.totalorder %s25, 1
      %p190 = por %p188, %p189
      %p191 = scmp.ne.s32.totalorder %s182, %s183
      %p192 = scmp.eq.s32.totalorder %s25, 0
      %p193 = por %p191, %p192
      %p194 = scmp.ne.s32.totalorder %s182, %s183
      %p195 = scmp.eq.s32.totalorder %s26, 1
      %p196 = por %p194, %p195
      %p198 = scmp.ne.s32.totalorder %s183, %s197
      %p199 = scmp.eq.s32.totalorder %s26, 0
      %p200 = por %p198, %p199
      %s202 = sadd.s32 %s201, 1
      %p205 = scmp.eq.s32.totalorder %s20, 1
      %p206 = scmp.ne.s32.totalorder %s201, %s203
      %p207 = scmp.eq.s32.totalorder %s20, 0
      %p208 = por %p206, %p207
      %p209 = scmp.ne.s32.totalorder %s201, %s203
      %p210 = scmp.eq.s32.totalorder %s25, 1
      %p211 = por %p209, %p210
      %p212 = scmp.ne.s32.totalorder %s203, %s204
      %p213 = scmp.eq.s32.totalorder %s25, 0
      %p214 = por %p212, %p213
      %p215 = scmp.ne.s32.totalorder %s203, %s204
      %p216 = scmp.eq.s32.totalorder %s26, 1
      %p217 = por %p215, %p216
      %p219 = scmp.ne.s32.totalorder %s204, %s218
      %p220 = scmp.eq.s32.totalorder %s26, 0
      %p221 = por %p219, %p220
      %s223 = sadd.s32 %s222, 1
      %p226 = scmp.eq.s32.totalorder %s20, 1
      %p227 = scmp.ne.s32.totalorder %s222, %s224
      %p228 = scmp.eq.s32.totalorder %s20, 0
      %p229 = por %p227, %p228
      %p230 = scmp.ne.s32.totalorder %s222, %s224
      %p231 = scmp.eq.s32.totalorder %s25, 1
      %p232 = por %p230, %p231
      %p233 = scmp.ne.s32.totalorder %s224, %s225
      %p234 = scmp.eq.s32.totalorder %s25, 0
      %p235 = por %p233, %p234
      %p236 = scmp.ne.s32.totalorder %s224, %s225
      %p237 = scmp.eq.s32.totalorder %s26, 1
      %p238 = por %p236, %p237
      %p240 = scmp.ne.s32.totalorder %s225, %s239
      %p241 = scmp.eq.s32.totalorder %s26, 0
      %p242 = por %p240, %p241
      %s243 = ssub.s32 %s20, %s27
      %p244 = scmp.eq.s32.totalorder %s243, 0
      %s246 = sadd.s32 %s245, 1
      %s247 = scalar_select %p244, %s245, %s246
      %p250 = pneg %p244
      %p251 = scmp.eq.s32.totalorder %s20, 1
      %p252 = por %p250, %p251
      %p253 = scmp.ne.s32.totalorder %s245, %s248
      %p254 = scmp.eq.s32.totalorder %s20, 0
      %p255 = por %p253, %p254
      %p256 = scmp.ne.s32.totalorder %s245, %s248
      %p257 = scmp.eq.s32.totalorder %s25, 1
      %p258 = por %p256, %p257
      %p259 = scmp.ne.s32.totalorder %s248, %s249
      %p260 = scmp.eq.s32.totalorder %s25, 0
      %p261 = por %p259, %p260
      %p262 = scmp.ne.s32.totalorder %s248, %s249
      %p263 = scmp.eq.s32.totalorder %s26, 1
      %p264 = por %p262, %p263
      %p266 = scmp.ne.s32.totalorder %s249, %s265
      %p267 = scmp.eq.s32.totalorder %s26, 0
      %p268 = por %p266, %p267
      %p269 = scmp.le.s32.totalorder 1, %s20
      %p270 = scmp.lt.s32.totalorder %s20, 3
      %p271 = pnand %p269, %p270
      %p272 = pneg %p271
      // Predicated region
      $region9: #{tpu_custom_call.1} parent=5 // pred_check
        _
      $region10: #{tpu_custom_call.1} parent=5 // pred_check_branch
        %274 = sbr.rel (%p271) target = $region12
      $region11: #{tpu_custom_call.1} parent=5 // pred_region
        %s275 = ssub.s32 %s20, 1
        // Predicated region
        $region13: #{tpu_custom_call.1} parent=11 // pred_check
          %p276 = pneg %p67
        $region14: #{tpu_custom_call.1} parent=11 // pred_check_branch
          %278 = sbr.rel (%p276) target = $region16
        $region15: #{tpu_custom_call.1} parent=11 // pred_region
          _
        $region16: #{tpu_custom_call.1} parent=11 // pred_fallthru
          _
        // Predicated region
        $region17: #{tpu_custom_call.1} parent=11 // pred_check
          %p279 = pneg %p88
        $region18: #{tpu_custom_call.1} parent=11 // pred_check_branch
          %281 = sbr.rel (%p279) target = $region20
        $region19: #{tpu_custom_call.1} parent=11 // pred_region
          _
        $region20: #{tpu_custom_call.1} parent=11 // pred_fallthru
          _
        // Predicated region
        $region21: #{tpu_custom_call.1} parent=11 // pred_check
          %p282 = pneg %p109
        $region22: #{tpu_custom_call.1} parent=11 // pred_check_branch
          %284 = sbr.rel (%p282) target = $region24
        $region23: #{tpu_custom_call.1} parent=11 // pred_region
          _
        $region24: #{tpu_custom_call.1} parent=11 // pred_fallthru
          _
        // Predicated region
        $region25: #{tpu_custom_call.1} parent=11 // pred_check
          %p285 = pneg %p130
        $region26: #{tpu_custom_call.1} parent=11 // pred_check_branch
          %287 = sbr.rel (%p285) target = $region28
        $region27: #{tpu_custom_call.1} parent=11 // pred_region
          _
        $region28: #{tpu_custom_call.1} parent=11 // pred_fallthru
          _
        // Predicated region
        $region29: #{tpu_custom_call.1} parent=11 // pred_check
          %p288 = pneg %p151
        $region30: #{tpu_custom_call.1} parent=11 // pred_check_branch
          %290 = sbr.rel (%p288) target = $region32
        $region31: #{tpu_custom_call.1} parent=11 // pred_region
          _
        $region32: #{tpu_custom_call.1} parent=11 // pred_fallthru
          _
        // Predicated region
        $region33: #{tpu_custom_call.1} parent=11 // pred_check
          %p291 = pneg %p172
        $region34: #{tpu_custom_call.1} parent=11 // pred_check_branch
          %293 = sbr.rel (%p291) target = $region36
        $region35: #{tpu_custom_call.1} parent=11 // pred_region
          _
        $region36: #{tpu_custom_call.1} parent=11 // pred_fallthru
          _
        // Predicated region
        $region37: #{tpu_custom_call.1} parent=11 // pred_check
          %p294 = pneg %p193
        $region38: #{tpu_custom_call.1} parent=11 // pred_check_branch
          %296 = sbr.rel (%p294) target = $region40
        $region39: #{tpu_custom_call.1} parent=11 // pred_region
          _
        $region40: #{tpu_custom_call.1} parent=11 // pred_fallthru
          _
        // Predicated region
        $region41: #{tpu_custom_call.1} parent=11 // pred_check
          %p297 = pneg %p214
        $region42: #{tpu_custom_call.1} parent=11 // pred_check_branch
          %299 = sbr.rel (%p297) target = $region44
        $region43: #{tpu_custom_call.1} parent=11 // pred_region
          _
        $region44: #{tpu_custom_call.1} parent=11 // pred_fallthru
          _
        // Predicated region
        $region45: #{tpu_custom_call.1} parent=11 // pred_check
          %p300 = pneg %p235
        $region46: #{tpu_custom_call.1} parent=11 // pred_check_branch
          %302 = sbr.rel (%p300) target = $region48
        $region47: #{tpu_custom_call.1} parent=11 // pred_region
          %304 = vsyncadd [#allocation3], 0
          %s306 = sshll.u32 %s9, 4
          %s307 = int_to_ptr.hbm [resolvable:$true] %s306
          %s308 = sshll.u32 [#allocation2], 4
          %s309 = int_to_ptr.vmem [resolvable:$true] %s308
          %311 = dma.hbm_to_vmem [thread:$0]  %s307, 128, %s309, [#allocation3]
        $region48: #{tpu_custom_call.1} parent=11 // pred_fallthru
          _
      $region12: #{tpu_custom_call.1} parent=5 // pred_fallthru
        _
      %p312 = scmp.lt.s32.totalorder %s20, 2
      // Predicated region
      $region49: #{tpu_custom_call.1} parent=5 // pred_check
        %p313 = pneg %p312
      $region50: #{tpu_custom_call.1} parent=5 // pred_check_branch
        %315 = sbr.rel (%p313) target = $region52
      $region51: #{tpu_custom_call.1} parent=5 // pred_region
        // Predicated region
        $region53: #{tpu_custom_call.1} parent=51 // pred_check
          %p316 = pneg %p40
        $region54: #{tpu_custom_call.1} parent=51 // pred_check_branch
          %318 = sbr.rel (%p316) target = $region56
        $region55: #{tpu_custom_call.1} parent=51 // pred_region
          %s319 = smul.u32 2, %s20
          %p320 = scmp.lt.s32.totalorder %s319, 3
          %s321 = scalar_select %p320, %s319, 3
          %s322 = smul.addr %s321, 4
          %s323 = scalar_lea.vmem %s0, %s322
          %s324 = smul.u32 2, %s20
        $region56: #{tpu_custom_call.1} parent=51 // pred_fallthru
          _
      $region52: #{tpu_custom_call.1} parent=5 // pred_fallthru
        _
      %p325 = scmp.le.s32.totalorder 1, %s20
      %p326 = scmp.lt.s32.totalorder %s20, 3
      %p327 = pnand %p325, %p326
      %p328 = pneg %p327
      // Predicated region
      $region57: #{tpu_custom_call.1} parent=5 // pred_check
        _
      $region58: #{tpu_custom_call.1} parent=5 // pred_check_branch
        %330 = sbr.rel (%p327) target = $region60
      $region59: #{tpu_custom_call.1} parent=5 // pred_region
        %s331 = ssub.s32 %s20, 1
        // Predicated region
        $region61: #{tpu_custom_call.1} parent=59 // pred_check
          %p332 = pneg %p235
        $region62: #{tpu_custom_call.1} parent=59 // pred_check_branch
          %334 = sbr.rel (%p332) target = $region64
        $region63: #{tpu_custom_call.1} parent=59 // pred_region
          %336 = dma.done [#allocation3], 128
        $region64: #{tpu_custom_call.1} parent=59 // pred_fallthru
          _
        %s337 = smul.u32 2, %s25
        %p338 = scmp.lt.s32.totalorder %s337, 3
        %s339 = scalar_select %p338, %s337, 3
        %s340 = smul.addr %s339, 4
        %s341 = scalar_lea.vmem %s0, %s340
        %p342 = pneg %p46
        %p343 = pneg %p43
        %p344 = pneg %p67
        %p345 = pneg %p64
        %p346 = pneg %p88
        %p347 = pneg %p85
        %p348 = pneg %p109
        %p349 = pneg %p106
        %p350 = pneg %p130
        %p351 = pneg %p127
        %p352 = pneg %p151
        %p353 = pneg %p148
        %p354 = pneg %p172
        %p355 = pneg %p169
        %p356 = pneg %p193
        %p357 = pneg %p190
        %p358 = pneg %p214
        %p359 = pneg %p211
        %p360 = pneg %p235
        %p361 = pneg %p232
        %p362 = pneg %p261
        %p363 = pneg %p258
        %s364 = sand.u32 %s248, 1
        %s365 = scalar_lea.sflag [#allocation4], %s364
        %s366 = sand.u32 %s248, 1
        %s367 = smul.addr %s366, 16
        %s368 = scalar_lea.vmem [#allocation5], %s367
        %s369 = smul.u32 2, %s25
        %p370 = scmp.lt.s32.totalorder %s369, 3
        %s371 = scalar_select %p370, %s369, 3
        %s372 = smul.addr %s371, 4
        %s373 = scalar_lea.vmem %s0, %s372
        %s374 = smul.u32 2, %s25
        %s375 = smul.u32 2, %s25
        %v376 = vld [vmem:[%s373] sm:$0xff]
        %v377 = vld [vmem:[#allocation2] sm:$0xff]
        %v378 = vld [vmem:[%s1] sm:$0x3]
        %v379 = vld [vmem:[%s2] sm:$0x3]
        %381 = vset.pattern.permute.xlu0 0
        %382 = vperm.xlu0 %381, %v379
        %v383 = vpop.permute.xlu0 %382
        %386 = vst [vmem:[#allocation1] ss:$2 sm:$0xff] %v376
        %v387 = vld.sshfl [vmem:[#allocation1] sm:$0xff pattern:$0x75316420]
        %v388 = vld.sshfl [vmem:[#allocation1 + $0x8] sm:$0xff pattern:$0x75316420]
        %vm389 = vcmask 31744
        %v391 = vsel %vm389, %v378, 0
        %vm393 = vcmask 1043456
        %v394 = vsel %vm393, %v387, 0
        %v396 = vsel %vm393, %v388, 0
        %398 = vmatpush.msra.mxu0 0.0
        %399 = vmatpush.msra.mxu0 0.0
        %400 = vmatpush.msra.mxu0 0.0
        %401 = vmatpush.msra.mxu0 0.0
        %402 = vmatpush.msra.mxu0 0.0
        %403 = vmatpush.msra.mxu0 0.0
        %404 = vmatpush.msra.mxu0 0.0
        %405 = vmatpush.msra.mxu0 0.0
        %406 = vmatpush.msra.mxu0 0.0
        %407 = vmatpush.msra.mxu0 0.0
        %408 = vmatpush.msra.mxu0 0.0
        %409 = vmatpush.msra.mxu0 0.0
        %410 = vmatpush.msra.mxu0 0.0
        %411 = vmatpush.msra.mxu0 0.0
        %412 = vmatpush.msra.mxu0 0.0
        %413 = vmatpush.msra.mxu0 %v394
        %414 = vmatmul.f32.gmra.mxu0 %v391
        %v415 = vpop.f32.mrf.mxu0
        %v416 = vadd.f32 %v383, %v415
        %417 = vdwg.mxu0
        %418 = vmatpush.msra.mxu0 0.0
        %419 = vmatpush.msra.mxu0 0.0
        %420 = vmatpush.msra.mxu0 0.0
        %421 = vmatpush.msra.mxu0 0.0
        %422 = vmatpush.msra.mxu0 0.0
        %423 = vmatpush.msra.mxu0 0.0
        %424 = vmatpush.msra.mxu0 0.0
        %425 = vmatpush.msra.mxu0 0.0
        %426 = vmatpush.msra.mxu0 0.0
        %427 = vmatpush.msra.mxu0 0.0
        %428 = vmatpush.msra.mxu0 0.0
        %429 = vmatpush.msra.mxu0 0.0
        %430 = vmatpush.msra.mxu0 0.0
        %431 = vmatpush.msra.mxu0 0.0
        %432 = vmatpush.msra.mxu0 0.0
        %433 = vmatpush.msra.mxu0 %v396
        %434 = vmatmul.f32.gmra.mxu0 %v391
        %v435 = vpop.f32.mrf.mxu0
        %v436 = vadd.f32 %v383, %v435
        %437 = vdwg.mxu0
        %v438 = vmax.f32 %v416, 0.0
        %v439 = vmax.f32 %v436, 0.0
        %440 = vrot.lane.b32.xlu0 %v438, 16
        %v441 = vpop.permute.xlu0 %440
        %442 = vrot.lane.b32.xlu0 %v439, 16
        %v443 = vpop.permute.xlu0 %442
        %v444 = vlaneseq
        %v445 = vand.u32 %v444, 127
        %vm446 = vcmp.lt.s32.totalorder %v445, 16
        %v447 = vsel %vm446, %v441, %v443
        %v448 = vsel %vm446, %v443, %v441
        %v450 = vperm.slane %v377, 0
        %v451 = vperm.slane %v377, 4
        %v454 = vperm.slane %v450, 0
        %v455 = vperm.slane %v451, 0
        %v456 = vmul.f32 %v448, %v454
        %v457 = vmul.f32 %v447, %v455
        %458 = vrot.lane.b32.xlu0 %v438, 112
        %v459 = vpop.permute.xlu0 %458
        %460 = vrot.lane.b32.xlu0 %v439, 112
        %v461 = vpop.permute.xlu0 %460
        %vm462 = vcmp.lt.s32.totalorder %v445, 112
        %v463 = vsel %vm462, %v459, %v461
        %v464 = vsel %vm462, %v461, %v459
        %v465 = vperm.slane %v377, 1
        %v466 = vperm.slane %v377, 5
        %v469 = vperm.slane %v465, 1
        %v470 = vperm.slane %v466, 1
        %v471 = vmul.f32 %v463, %v469
        %v472 = vmul.f32 %v464, %v470
        %v473 = vld [vmem:[%s3] sm:$0x3]
        %v476 = vrot.slane %v438, 6
        %v477 = vrot.slane %v439, 6
        %v482 = vrot.slane %v471, 4
        %v483 = vrot.slane %v472, 4
        %vm486 = vcmask 1041408
        %v487 = vsel %vm486, %v456, %v476
        %v488 = vsel %vm486, %v457, %v477
        %v489 = vsel %vm393, %v487, %v482
        %v490 = vsel %vm393, %v488, %v483
        %v491 = vld [vmem:[%s4] sm:$0x3]
        %493 = vset.pattern.permute.xlu0 0
        %494 = vperm.xlu0 %493, %v491
        %v495 = vpop.permute.xlu0 %494
        %vm497 = vcmask 48128
        %v499 = vsel %vm497, %v473, 0
        %vm501 = vcmask 1045504
        %v503 = vsel %vm501, %v489, 0
        %v506 = vsel %vm501, %v490, 0
        %508 = vmatpush.msra.mxu0 0.0
        %509 = vmatpush.msra.mxu0 0.0
        %510 = vmatpush.msra.mxu0 0.0
        %511 = vmatpush.msra.mxu0 0.0
        %512 = vmatpush.msra.mxu0 0.0
        %513 = vmatpush.msra.mxu0 0.0
        %514 = vmatpush.msra.mxu0 0.0
        %515 = vmatpush.msra.mxu0 0.0
        %516 = vmatpush.msra.mxu0 0.0
        %517 = vmatpush.msra.mxu0 0.0
        %518 = vmatpush.msra.mxu0 0.0
        %519 = vmatpush.msra.mxu0 0.0
        %520 = vmatpush.msra.mxu0 0.0
        %521 = vmatpush.msra.mxu0 0.0
        %522 = vmatpush.msra.mxu0 0.0
        %523 = vmatpush.msra.mxu0 %v503
        %524 = vmatmul.f32.gmra.mxu0 %v499
        %v525 = vpop.f32.mrf.mxu0
        %v526 = vadd.f32 %v495, %v525
        %527 = vdwg.mxu0
        %528 = vmatpush.msra.mxu0 0.0
        %529 = vmatpush.msra.mxu0 0.0
        %530 = vmatpush.msra.mxu0 0.0
        %531 = vmatpush.msra.mxu0 0.0
        %532 = vmatpush.msra.mxu0 0.0
        %533 = vmatpush.msra.mxu0 0.0
        %534 = vmatpush.msra.mxu0 0.0
        %535 = vmatpush.msra.mxu0 0.0
        %536 = vmatpush.msra.mxu0 0.0
        %537 = vmatpush.msra.mxu0 0.0
        %538 = vmatpush.msra.mxu0 0.0
        %539 = vmatpush.msra.mxu0 0.0
        %540 = vmatpush.msra.mxu0 0.0
        %541 = vmatpush.msra.mxu0 0.0
        %542 = vmatpush.msra.mxu0 0.0
        %543 = vmatpush.msra.mxu0 %v506
        %544 = vmatmul.f32.gmra.mxu0 %v499
        %v545 = vpop.f32.mrf.mxu0
        %v546 = vadd.f32 %v495, %v545
        %547 = vdwg.mxu0
        %v548 = vmax.f32 %v526, 0.0
        %v549 = vmax.f32 %v546, 0.0
        %550 = vrot.lane.b32.xlu0 %v548, 1
        %v551 = vpop.permute.xlu0 %550
        %552 = vrot.lane.b32.xlu0 %v549, 1
        %v553 = vpop.permute.xlu0 %552
        %vm554 = vcmp.lt.s32.totalorder %v445, 1
        %v555 = vsel %vm554, %v551, %v553
        %v556 = vsel %vm554, %v553, %v551
        %v557 = vperm.slane %v377, 2
        %v558 = vperm.slane %v377, 6
        %v561 = vperm.slane %v557, 2
        %v562 = vperm.slane %v558, 2
        %v563 = vmul.f32 %v556, %v561
        %v564 = vmul.f32 %v555, %v562
        %565 = vrot.lane.b32.xlu0 %v548, 127
        %v566 = vpop.permute.xlu0 %565
        %567 = vrot.lane.b32.xlu0 %v549, 127
        %v568 = vpop.permute.xlu0 %567
        %vm569 = vcmp.lt.s32.totalorder %v445, 127
        %v570 = vsel %vm569, %v566, %v568
        %v571 = vsel %vm569, %v568, %v566
        %v572 = vperm.slane %v377, 3
        %v573 = vperm.slane %v377, 7
        %v576 = vperm.slane %v572, 3
        %v577 = vperm.slane %v573, 3
        %v578 = vmul.f32 %v570, %v576
        %v579 = vmul.f32 %v571, %v577
        %v580 = vld [vmem:[%s5] sm:$0x3]
        %v583 = vrot.slane %v548, 6
        %v584 = vrot.slane %v549, 6
        %v589 = vrot.slane %v578, 4
        %v590 = vrot.slane %v579, 4
        %v593 = vsel %vm486, %v563, %v583
        %v594 = vsel %vm486, %v564, %v584
        %v595 = vsel %vm393, %v593, %v589
        %v596 = vsel %vm393, %v594, %v590
        %v597 = vld [vmem:[%s6] sm:$0x3]
        %599 = vset.pattern.permute.xlu0 0
        %600 = vperm.xlu0 %599, %v597
        %v601 = vpop.permute.xlu0 %600
        %v604 = vsel %vm497, %v580, 0
        %v607 = vsel %vm501, %v595, 0
        %v610 = vsel %vm501, %v596, 0
        %612 = vmatpush.msra.mxu0 0.0
        %613 = vmatpush.msra.mxu0 0.0
        %614 = vmatpush.msra.mxu0 0.0
        %615 = vmatpush.msra.mxu0 0.0
        %616 = vmatpush.msra.mxu0 0.0
        %617 = vmatpush.msra.mxu0 0.0
        %618 = vmatpush.msra.mxu0 0.0
        %619 = vmatpush.msra.mxu0 0.0
        %620 = vmatpush.msra.mxu0 0.0
        %621 = vmatpush.msra.mxu0 0.0
        %622 = vmatpush.msra.mxu0 0.0
        %623 = vmatpush.msra.mxu0 0.0
        %624 = vmatpush.msra.mxu0 0.0
        %625 = vmatpush.msra.mxu0 0.0
        %626 = vmatpush.msra.mxu0 0.0
        %627 = vmatpush.msra.mxu0 %v607
        %628 = vmatmul.f32.gmra.mxu0 %v604
        %v629 = vpop.f32.mrf.mxu0
        %v630 = vadd.f32 %v601, %v629
        %631 = vdwg.mxu0
        %632 = vmatpush.msra.mxu0 0.0
        %633 = vmatpush.msra.mxu0 0.0
        %634 = vmatpush.msra.mxu0 0.0
        %635 = vmatpush.msra.mxu0 0.0
        %636 = vmatpush.msra.mxu0 0.0
        %637 = vmatpush.msra.mxu0 0.0
        %638 = vmatpush.msra.mxu0 0.0
        %639 = vmatpush.msra.mxu0 0.0
        %640 = vmatpush.msra.mxu0 0.0
        %641 = vmatpush.msra.mxu0 0.0
        %642 = vmatpush.msra.mxu0 0.0
        %643 = vmatpush.msra.mxu0 0.0
        %644 = vmatpush.msra.mxu0 0.0
        %645 = vmatpush.msra.mxu0 0.0
        %646 = vmatpush.msra.mxu0 0.0
        %647 = vmatpush.msra.mxu0 %v610
        %648 = vmatmul.f32.gmra.mxu0 %v604
        %v649 = vpop.f32.mrf.mxu0
        %v650 = vadd.f32 %v601, %v649
        %651 = vdwg.mxu0
        %v652 = vmax.f32 %v630, 0.0
        %v653 = vmax.f32 %v650, 0.0
        %v654 = vld [vmem:[%s7] sm:$0xff]
        %v655 = vld [vmem:[%s8] sm:$0xff]
        %657 = vset.pattern.permute.xlu0 0
        %658 = vperm.xlu0 %657, %v655
        %v659 = vpop.permute.xlu0 %658
        %vm661 = vcmask 15360
        %v663 = vsel %vm661, %v654, 0
        %v666 = vsel %vm486, %v652, 0
        %v669 = vsel %vm486, %v653, 0
        %671 = vmatpush.msra.mxu0 0.0
        %672 = vmatpush.msra.mxu0 0.0
        %673 = vmatpush.msra.mxu0 0.0
        %674 = vmatpush.msra.mxu0 0.0
        %675 = vmatpush.msra.mxu0 0.0
        %676 = vmatpush.msra.mxu0 0.0
        %677 = vmatpush.msra.mxu0 0.0
        %678 = vmatpush.msra.mxu0 0.0
        %679 = vmatpush.msra.mxu0 0.0
        %680 = vmatpush.msra.mxu0 0.0
        %681 = vmatpush.msra.mxu0 0.0
        %682 = vmatpush.msra.mxu0 0.0
        %683 = vmatpush.msra.mxu0 0.0
        %684 = vmatpush.msra.mxu0 0.0
        %685 = vmatpush.msra.mxu0 0.0
        %686 = vmatpush.msra.mxu0 %v666
        %687 = vmatmul.f32.gmra.mxu0 %v663
        %v688 = vpop.f32.mrf.mxu0
        %v689 = vadd.f32 %v659, %v688
        %690 = vdwg.mxu0
        %691 = vmatpush.msra.mxu0 0.0
        %692 = vmatpush.msra.mxu0 0.0
        %693 = vmatpush.msra.mxu0 0.0
        %694 = vmatpush.msra.mxu0 0.0
        %695 = vmatpush.msra.mxu0 0.0
        %696 = vmatpush.msra.mxu0 0.0
        %697 = vmatpush.msra.mxu0 0.0
        %698 = vmatpush.msra.mxu0 0.0
        %699 = vmatpush.msra.mxu0 0.0
        %700 = vmatpush.msra.mxu0 0.0
        %701 = vmatpush.msra.mxu0 0.0
        %702 = vmatpush.msra.mxu0 0.0
        %703 = vmatpush.msra.mxu0 0.0
        %704 = vmatpush.msra.mxu0 0.0
        %705 = vmatpush.msra.mxu0 0.0
        %706 = vmatpush.msra.mxu0 %v669
        %707 = vmatmul.f32.gmra.mxu0 %v663
        %v708 = vpop.f32.mrf.mxu0
        %v709 = vadd.f32 %v659, %v708
        %710 = vdwg.mxu0
        %711 = vst [vmem:[%s368] sm:$0xff] %v689
        %712 = vst [vmem:[%s368 + $0x8] sm:$0xff] %v709
        %s713 = sand.u32 %s248, 1
        %s714 = scalar_lea.sflag [#allocation4], %s713
        %s715 = sand.u32 %s248, 1
        %s716 = smul.addr %s715, 16
        %s717 = scalar_lea.vmem [#allocation5], %s716
        // Predicated region
        $region65: #{tpu_custom_call.1} parent=59 // pred_check
          %p718 = pneg %p258
        $region66: #{tpu_custom_call.1} parent=59 // pred_check_branch
          %720 = sbr.rel (%p718) target = $region68
        $region67: #{tpu_custom_call.1} parent=59 // pred_region
          %s721 = smul.u32 2, %s25
          %723 = vsyncadd %s714, 0
          %s724 = smul.addr %s721, 8
          %s725 = scalar_lea.hbm %s10, %s724
          %s727 = sshll.u32 %s717, 4
          %s728 = int_to_ptr.vmem [resolvable:$true] %s727
          %s729 = sshll.u32 %s725, 4
          %s730 = int_to_ptr.hbm [resolvable:$true] %s729
          %732 = dma.vmem_to_hbm [thread:$0]  %s728, 256, %s730, %s714
        $region68: #{tpu_custom_call.1} parent=59 // pred_fallthru
          _
      $region60: #{tpu_custom_call.1} parent=5 // pred_fallthru
        _
      %p733 = scmp.le.s32.totalorder 2, %s20
      // Predicated region
      $region69: #{tpu_custom_call.1} parent=5 // pred_check
        %p734 = pneg %p733
      $region70: #{tpu_custom_call.1} parent=5 // pred_check_branch
        %736 = sbr.rel (%p734) target = $region72
      $region71: #{tpu_custom_call.1} parent=5 // pred_region
        %s737 = ssub.s32 %s20, 2
        // Predicated region
        $region73: #{tpu_custom_call.1} parent=71 // pred_check
          %p738 = pneg %p264
        $region74: #{tpu_custom_call.1} parent=71 // pred_check_branch
          %740 = sbr.rel (%p738) target = $region76
        $region75: #{tpu_custom_call.1} parent=71 // pred_region
          %s741 = sand.u32 %s249, 1
          %s742 = scalar_lea.sflag [#allocation4], %s741
          %s743 = sand.u32 %s249, 1
          %s744 = smul.addr %s743, 16
          %s745 = scalar_lea.vmem [#allocation5], %s744
          %747 = dma.done %s742, 256
        $region76: #{tpu_custom_call.1} parent=71 // pred_fallthru
          _
      $region72: #{tpu_custom_call.1} parent=5 // pred_fallthru
        _
    $region6: #{tpu_custom_call.1} parent=1 // loop_footer
      %s24 = sadd.s32 1, %s20
    $region7: #{tpu_custom_call.1} parent=1 // loop_footer_branch
      %19 = sbr.rel target = $region3
    $region8: #{tpu_custom_call.1} parent=1 // loop_exit
      _
    %748 = vsyncpa [#allocation3], 1
    %s749 = scalar_lea.sflag [#allocation3], 1
    %750 = vsyncpa %s749, 1
    %751 = vsyncpa [#allocation4], 1
    %s752 = scalar_lea.sflag [#allocation4], 1
    %753 = vsyncpa %s752, 1

</llo_original>
